<compile_context>
chip_gen: v7x
topology: tpu7x:2x2x1
jax: 0.10.0
libtpu: 0.0.40
codegen_flags: <defaults>
</compile_context>

<pallas_src>
import functools

import jax
import jax.numpy as jnp
from jax.experimental import pallas as pl
from jax.experimental.pallas import tpu as pltpu


def _round_up(n: int, m: int) -> int:
    return (n + m - 1) // m * m


def fnn_block_kernel(seed_ref, x_ref, wt_ref, gamma_ref, beta_ref, o_ref, *,
                     dropout_p: float, eps: float):
    # ---- Linear (MXU): y = x @ W^T ----
    # Linear bias intentionally omitted: train-mode BatchNorm subtracts the
    # per-feature batch mean, which cancels any constant added before BN.
    x = x_ref[...]                                    # (B, Din)   f32
    wt = wt_ref[...]                                  # (Din, TN)  f32
    y = jnp.dot(x, wt, preferred_element_type=jnp.float32)   # (B, TN) f32

    # ---- BatchNorm1d (train mode: batch mean, biased variance), folded affine ----
    mean = jnp.mean(y, axis=0, keepdims=True)                       # (1, TN)
    var = jnp.mean(jnp.square(y - mean), axis=0, keepdims=True)     # biased
    scale = gamma_ref[...] * jax.lax.rsqrt(var + jnp.float32(eps))  # (1, TN)
    shift = beta_ref[...] - mean * scale
    y = y * scale + shift

    # ---- ReLU (VPU) ----
    y = jnp.maximum(y, jnp.float32(0.0))

    # ---- Dropout (inverted), counter-based hash PRNG ----
    if dropout_p > 0.0:
        tn = y.shape[1]
        tile = pl.program_id(0).astype(jnp.uint32)
        rows = jax.lax.broadcasted_iota(jnp.int32, y.shape, 0).astype(jnp.uint32)
        cols = jax.lax.broadcasted_iota(jnp.int32, y.shape, 1).astype(jnp.uint32)
        cols = cols + tile * jnp.uint32(tn)           # global feature index
        seed = seed_ref[0].astype(jnp.uint32)
        h = seed ^ (rows * jnp.uint32(0x9E3779B1)) ^ (cols * jnp.uint32(0x85EBCA77))
        # murmur3-style finalizer for avalanche
        h = h ^ (h >> 16)
        h = h * jnp.uint32(0x85EBCA6B)
        h = h ^ (h >> 13)
        h = h * jnp.uint32(0xC2B2AE35)
        h = h ^ (h >> 16)
        # integer threshold: keep iff h >= p * 2^32  (P[keep] = 1 - p)
        thresh = jnp.uint32(min(int(dropout_p * (1 << 32)), (1 << 32) - 1))
        keep = h >= thresh
        y = jnp.where(keep, y * jnp.float32(1.0 / (1.0 - dropout_p)),
                      jnp.float32(0.0))

    o_ref[...] = y.astype(o_ref.dtype)


def fnn_block(x, w_t, gamma, beta, seed, *, dropout_p=0.1, eps=1e-5):
    """Fused Linear -> BatchNorm1d(train) -> ReLU -> Dropout.

    x:    (B, Din)    float32
    w_t:  (Din, Dout) float32  -- Linear weight, PRE-transposed at load time
    gamma, beta: (Dout,)       -- BatchNorm1d affine parameters
    seed: int                  -- dropout seed
    """
    B, Din = x.shape
    Dout = w_t.shape[1]

    # Lane-dense output: pad the feature axis to a multiple of 128; pick the
    # largest tile (<= 512) that divides the padded width.  Every Dout tile is
    # fully independent (BN stats are per-feature), so the fusion survives.
    Dout_pad = _round_up(Dout, 128)
    tn = 512 if Dout_pad % 512 == 0 else (256 if Dout_pad % 256 == 0 else 128)
    n_tiles = Dout_pad // tn
    pad = Dout_pad - Dout

    wt_p = jnp.pad(jnp.asarray(w_t, jnp.float32), ((0, 0), (0, pad)))
    g_p = jnp.pad(jnp.asarray(gamma, jnp.float32).reshape(1, Dout),
                  ((0, 0), (0, pad)), constant_values=1.0)
    b_p = jnp.pad(jnp.asarray(beta, jnp.float32).reshape(1, Dout),
                  ((0, 0), (0, pad)))
    seed_arr = jnp.asarray([seed], dtype=jnp.int32)
    x = jnp.asarray(x, jnp.float32)

    kernel = functools.partial(fnn_block_kernel,
                               dropout_p=float(dropout_p), eps=float(eps))

    # VMEM budget: resident x + double-buffered (W^T, out, gamma, beta) tiles.
    vmem_bytes = 4 * (B * Din + 2 * (Din * tn + B * tn + 2 * tn))
    vmem_limit = int(min(max(2 * vmem_bytes, 4 << 20), 32 << 20))  # v7x-safe

    out_padded = pl.pallas_call(
        kernel,
        out_shape=jax.ShapeDtypeStruct((B, Dout_pad), jnp.float32),
        grid_spec=pltpu.PrefetchScalarGridSpec(
            num_scalar_prefetch=1,               # seed -> SMEM
            grid=(n_tiles,),
            in_specs=[
                pl.BlockSpec((B, Din), lambda j, s: (0, 0)),    # x (resident)
                pl.BlockSpec((Din, tn), lambda j, s: (0, j)),   # W^T tile
                pl.BlockSpec((1, tn), lambda j, s: (0, j)),     # gamma tile
                pl.BlockSpec((1, tn), lambda j, s: (0, j)),     # beta tile
            ],
            out_specs=pl.BlockSpec((B, tn), lambda j, s: (0, j)),
        ),
        compiler_params=pltpu.CompilerParams(
            dimension_semantics=("parallel",),   # feature tiles are independent
            vmem_limit_bytes=vmem_limit,
        ),
    )(seed_arr, x, wt_p, g_p, b_p)

    return out_padded[:, :Dout]


if __name__ == "__main__":
    # Small shapes consistent with FnnBlock(input_dim=32, output_dim=32).
    batch, input_dim, output_dim = 8, 32, 32
    dropout_p = 0.1

    key = jax.random.PRNGKey(0)
    kx, kw, kb = jax.random.split(key, 3)

    x = jax.random.normal(kx, (batch, input_dim), dtype=jnp.float32)

    # torch.nn.Linear default init: U(-1/sqrt(in), 1/sqrt(in)).
    bound = 1.0 / (input_dim ** 0.5)
    w = jax.random.uniform(kw, (output_dim, input_dim), jnp.float32, -bound, bound)
    b = jax.random.uniform(kb, (output_dim,), jnp.float32, -bound, bound)  # cancelled by train-mode BN
    gamma = jnp.ones((output_dim,), jnp.float32)   # BatchNorm1d weight
    beta = jnp.zeros((output_dim,), jnp.float32)   # BatchNorm1d bias

    # Hoisted out of the hot path: transpose the Linear weight once at "load time".
    w_t = w.T                                       # (Din, Dout)

    # Correctness check vs pure-JAX reference with dropout disabled.
    # (Linear bias is cancelled by train-mode BN, so the reference omits it too.)
    y_lin = x @ w_t
    mean = jnp.mean(y_lin, axis=0, keepdims=True)
    var = jnp.mean((y_lin - mean) ** 2, axis=0, keepdims=True)
    ref = jnp.maximum((y_lin - mean) * jax.lax.rsqrt(var + 1e-5) * gamma + beta, 0.0)
    got = fnn_block(x, w_t, gamma, beta, seed=0, dropout_p=0.0)
    assert jnp.allclose(got, ref, atol=1e-4, rtol=1e-4), "mismatch vs reference"

    # Full forward pass with dropout enabled.
    out = fnn_block(x, w_t, gamma, beta, seed=1234, dropout_p=dropout_p)
    out = jax.block_until_ready(out)

    assert out.shape == (batch, output_dim)
    assert out.dtype == jnp.float32
    print("KERNEL_OK")
</pallas_src>

<mosaic_0001>
module attributes {stable_mosaic.version = 11 : i64} {
  func.func @fnn_block_kernel(%arg0: i32, %arg1: memref<1xi32, #tpu.memory_space<smem>>, %arg2: memref<8x32xf32, #tpu.memory_space<vmem>>, %arg3: memref<32x128xf32, #tpu.memory_space<vmem>>, %arg4: memref<1x128xf32, #tpu.memory_space<vmem>>, %arg5: memref<1x128xf32, #tpu.memory_space<vmem>>, %arg6: memref<8x128xf32, #tpu.memory_space<vmem>>) attributes {dimension_semantics = [#tpu.dimension_semantics<parallel>], iteration_bounds = array<i64: 1>, scalar_prefetch = 1 : i64, scratch_operands = 0 : i64, tpu.core_type = #tpu.core_type<tc>, window_params = [{pipeline_mode = #tpu.pipeline_mode<synchronous>, transform_indices = @transform_0, window_bounds = array<i64: 8, 32>}, {transform_indices = @transform_1, window_bounds = array<i64: 32, 128>}, {transform_indices = @transform_2, window_bounds = array<i64: 1, 128>}, {transform_indices = @transform_3, window_bounds = array<i64: 1, 128>}, {transform_indices = @transform_4, window_bounds = array<i64: 8, 128>}]} {
    %c0 = arith.constant 0 : index
    %c0_0 = arith.constant 0 : index
    %0 = vector.load %arg2[%c0, %c0_0] : memref<8x32xf32, #tpu.memory_space<vmem>>, vector<8x32xf32>
    %c0_1 = arith.constant 0 : index
    %c0_2 = arith.constant 0 : index
    %1 = vector.load %arg3[%c0_1, %c0_2] : memref<32x128xf32, #tpu.memory_space<vmem>>, vector<32x128xf32>
    %cst = arith.constant dense<0.000000e+00> : vector<8x128xf32>
    %2 = tpu.matmul %0, %1, %cst {dimension_numbers = #tpu.dot_dimension_numbers<[1], [0], [0], [1], [0, 0, 1, 1], [], []>} : vector<8x32xf32>, vector<32x128xf32>, vector<8x128xf32> -> vector<8x128xf32>
    %cst_3 = arith.constant dense<0.000000e+00> : vector<128xf32>
    %3 = vector.multi_reduction <add>, %2, %cst_3 [0] : vector<8x128xf32> to vector<128xf32>
    %4 = vector.shape_cast %3 : vector<128xf32> to vector<1x128xf32>
    %cst_4 = arith.constant 8.000000e+00 : f32
    %5 = vector.broadcast %cst_4 : f32 to vector<1x128xf32>
    %6 = arith.divf %4, %5 : vector<1x128xf32>
    %7 = vector.broadcast %6 : vector<1x128xf32> to vector<8x128xf32>
    %8 = arith.subf %2, %7 : vector<8x128xf32>
    %9 = arith.mulf %8, %8 : vector<8x128xf32>
    %cst_5 = arith.constant dense<0.000000e+00> : vector<128xf32>
    %10 = vector.multi_reduction <add>, %9, %cst_5 [0] : vector<8x128xf32> to vector<128xf32>
    %11 = vector.shape_cast %10 : vector<128xf32> to vector<1x128xf32>
    %cst_6 = arith.constant 8.000000e+00 : f32
    %12 = vector.broadcast %cst_6 : f32 to vector<1x128xf32>
    %13 = arith.divf %11, %12 : vector<1x128xf32>
    %c0_7 = arith.constant 0 : index
    %c0_8 = arith.constant 0 : index
    %14 = vector.load %arg4[%c0_7, %c0_8] : memref<1x128xf32, #tpu.memory_space<vmem>>, vector<1x128xf32>
    %cst_9 = arith.constant 9.99999974E-6 : f32
    %15 = vector.broadcast %cst_9 : f32 to vector<1x128xf32>
    %16 = arith.addf %13, %15 : vector<1x128xf32>
    %17 = math.rsqrt %16 : vector<1x128xf32>
    %18 = arith.mulf %14, %17 : vector<1x128xf32>
    %c0_10 = arith.constant 0 : index
    %c0_11 = arith.constant 0 : index
    %19 = vector.load %arg5[%c0_10, %c0_11] : memref<1x128xf32, #tpu.memory_space<vmem>>, vector<1x128xf32>
    %20 = arith.mulf %6, %18 : vector<1x128xf32>
    %21 = arith.subf %19, %20 : vector<1x128xf32>
    %22 = vector.broadcast %18 : vector<1x128xf32> to vector<8x128xf32>
    %23 = arith.mulf %2, %22 : vector<8x128xf32>
    %24 = vector.broadcast %21 : vector<1x128xf32> to vector<8x128xf32>
    %25 = arith.addf %23, %24 : vector<8x128xf32>
    %cst_12 = arith.constant 0.000000e+00 : f32
    %26 = vector.broadcast %cst_12 : f32 to vector<8x128xf32>
    %27 = arith.maximumf %25, %26 : vector<8x128xf32>
    %c0_13 = arith.constant 0 : index
    %c0_14 = arith.constant 0 : index
    %28 = vector.load %arg6[%c0_13, %c0_14] : memref<8x128xf32, #tpu.memory_space<vmem>>, vector<8x128xf32>
    tpu.vector_store %arg6[%c0_13, %c0_14], %27 {strides = array<i32>} : memref<8x128xf32, #tpu.memory_space<vmem>>, vector<8x128xf32>,
    return
  }
  func.func @transform_0(%arg0: i32, %arg1: memref<1xi32, #tpu.memory_space<smem>>) -> (i32, i32) {
    %c0_i32 = arith.constant 0 : i32
    %c0_i32_0 = arith.constant 0 : i32
    %c0_i32_1 = arith.constant 0 : i32
    return %c0_i32, %c0_i32_0 : i32, i32
  }
  func.func @transform_1(%arg0: i32, %arg1: memref<1xi32, #tpu.memory_space<smem>>) -> (i32, i32) {
    %c0_i32 = arith.constant 0 : i32
    %c0_i32_0 = arith.constant 0 : i32
    return %c0_i32, %arg0 : i32, i32
  }
  func.func @transform_2(%arg0: i32, %arg1: memref<1xi32, #tpu.memory_space<smem>>) -> (i32, i32) {
    %c0_i32 = arith.constant 0 : i32
    %c0_i32_0 = arith.constant 0 : i32
    return %c0_i32, %arg0 : i32, i32
  }
  func.func @transform_3(%arg0: i32, %arg1: memref<1xi32, #tpu.memory_space<smem>>) -> (i32, i32) {
    %c0_i32 = arith.constant 0 : i32
    %c0_i32_0 = arith.constant 0 : i32
    return %c0_i32, %arg0 : i32, i32
  }
  func.func @transform_4(%arg0: i32, %arg1: memref<1xi32, #tpu.memory_space<smem>>) -> (i32, i32) {
    %c0_i32 = arith.constant 0 : i32
    %c0_i32_0 = arith.constant 0 : i32
    return %c0_i32, %arg0 : i32, i32
  }
}

</mosaic_0001>

<llo_original>
// kernel: tpu_custom_call.1
$region0: #{tpu_custom_call.1}
  #allocation0 [shape = 'u32[]', space=smem, size = 0x4, offset = 0x4, fixed_abs, tag = 'smem constant byte address 0x4 - core index']
  #allocation1 [shape = 'u32[144,128]{1,0:T(1,128)}', space=vmem, size = 0x12000, scoped, tag = 'internal scratch']
  #allocation2 [shape = 's32[1]{0}', space=sflag, size = 0x4, scoped, tag = 'scoped memory for tpu_custom_call.1']
  #allocation3 [shape = 's32[1]{0:T(128)S(6)}', space=smem, size = 0x200, scoped, tag = 'prefetched SMEM operand 0']
  %s0 = inlined_call_operand.<no memory space> [shape: s32[1], index: 0, kind: input, shape index: {}]
  %s1 = inlined_call_operand.hbm [shape: f32[8,32], index: 1, kind: input, shape index: {}]
  %s2 = inlined_call_operand.hbm [shape: f32[32,128], index: 2, kind: input, shape index: {}]
  %s3 = inlined_call_operand.vmem [shape: f32[1,128], index: 3, kind: input, shape index: {}]
  %s4 = inlined_call_operand.vmem [shape: f32[1,128], index: 4, kind: input, shape index: {}]
  %s5 = inlined_call_operand.hbm [shape: f32[8,128], index: 5, kind: output, shape index: {}]
  %s6 = sld [smem:[#allocation0]]
  $region34: #{tpu_custom_call.1} parent=0
    _
  %s8 = ssub.s32 1, %s6
  %s9 = scalar_select 0, %s8, %s6
  %10 = sst [smem:[#allocation3]] %s0
  $region1: #{tpu_custom_call.1} parent=0
    #allocation4 [shape = 'u8[4096]{0}', space=vmem, size = 0x1000, scoped, tag = 'input window, operand 1, single buffered']
    #allocation5 [shape = 's32[1]{0}', space=sflag, size = 0x4, scoped, tag = 'scoped memory for tpu_custom_call.1']
    #allocation6 [shape = 's32[1]{0}', space=sflag, size = 0x4, scoped, tag = 'scoped memory for tpu_custom_call.1']
    #allocation7 [shape = 'u8[16384]{0}', space=vmem, size = 0x4000, scoped, tag = 'input window, operand 2, single buffered']
    #allocation8 [shape = 's32[1]{0}', space=sflag, size = 0x4, scoped, tag = 'scoped memory for tpu_custom_call.1']
    #allocation9 [shape = 'u8[4096]{0}', space=vmem, size = 0x1000, scoped, tag = 'output window, operand 0, single buffered']
    %11 = vsyncpa [#allocation5], 0
    %12 = vsyncpa [#allocation8], 0
    %13 = vsyncpa [#allocation6], 0
    // Predicated region
    $region2: #{tpu_custom_call.1} parent=1 // pred_check
      _
    $region3: #{tpu_custom_call.1} parent=1 // pred_check_branch
      %15 = sbr.rel (0) target = $region5
    $region4: #{tpu_custom_call.1} parent=1 // pred_region
      %s17 = ssub.s32 128, 128
      %18 = vsyncadd [#allocation5], %s17
      %s20 = sshll.u32 [#allocation4], 4
      %s21 = int_to_ptr.vmem [resolvable:$true] %s20
      %23 = dma.hbm_to_vmem [thread:$0]  %s1, 128, %s21, [#allocation5]
    $region5: #{tpu_custom_call.1} parent=1 // pred_fallthru
      _
    // Predicated region
    $region6: #{tpu_custom_call.1} parent=1 // pred_check
      _
    $region7: #{tpu_custom_call.1} parent=1 // pred_check_branch
      %25 = sbr.rel (0) target = $region9
    $region8: #{tpu_custom_call.1} parent=1 // pred_region
      %s27 = ssub.s32 512, 512
      %28 = vsyncadd [#allocation8], %s27
      %s29 = sshll.u32 [#allocation7], 4
      %s30 = int_to_ptr.vmem [resolvable:$true] %s29
      %35 = dma.hbm_to_vmem [thread:$0]  %s2, 512, %s30, [#allocation8], 128, 128, 8
    $region9: #{tpu_custom_call.1} parent=1 // pred_fallthru
      _
    // Predicated region
    $region10: #{tpu_custom_call.1} parent=1 // pred_check
      _
    $region11: #{tpu_custom_call.1} parent=1 // pred_check_branch
      %37 = sbr.rel (0) target = $region13
    $region12: #{tpu_custom_call.1} parent=1 // pred_region
      _
    $region13: #{tpu_custom_call.1} parent=1 // pred_fallthru
      _
    // Predicated region
    $region14: #{tpu_custom_call.1} parent=1 // pred_check
      _
    $region15: #{tpu_custom_call.1} parent=1 // pred_check_branch
      %39 = sbr.rel (0) target = $region17
    $region16: #{tpu_custom_call.1} parent=1 // pred_region
      _
    $region17: #{tpu_custom_call.1} parent=1 // pred_fallthru
      _
    // Predicated region
    $region18: #{tpu_custom_call.1} parent=1 // pred_check
      _
    $region19: #{tpu_custom_call.1} parent=1 // pred_check_branch
      %41 = sbr.rel (0) target = $region21
    $region20: #{tpu_custom_call.1} parent=1 // pred_region
      %42 = dma.done [#allocation5], 128
    $region21: #{tpu_custom_call.1} parent=1 // pred_fallthru
      _
    // Predicated region
    $region22: #{tpu_custom_call.1} parent=1 // pred_check
      _
    $region23: #{tpu_custom_call.1} parent=1 // pred_check_branch
      %44 = sbr.rel (0) target = $region25
    $region24: #{tpu_custom_call.1} parent=1 // pred_region
      %45 = dma.done [#allocation8], 512
    $region25: #{tpu_custom_call.1} parent=1 // pred_fallthru
      _
    %v46 = vld [vmem:[#allocation4] sm:$0xff]
    %v47 = vld [vmem:[#allocation7] sm:$0xff]
    %v48 = vld [vmem:[#allocation7 + $0x8] sm:$0xff]
    %v49 = vld [vmem:[#allocation7 + $0x10] sm:$0xff]
    %v50 = vld [vmem:[#allocation7 + $0x18] sm:$0xff]
    %vm51 = vcmask 261120
    %v53 = vsel %vm51, %v46, 0
    %55 = vmatprep.subr.mxu0 0.0
    %56 = vmatpush1.msra.mxu0 %v47
    %57 = vmatprep.subr.mxu0 0.0
    %58 = vmatpush1.msra.mxu0 %v48
    %59 = vmatprep.subr.mxu0 0.0
    %60 = vmatpush1.msra.mxu0 %v49
    %61 = vmatprep.subr.mxu0 0.0
    %62 = vmatpush1.msra.mxu0 %v50
    %63 = vmatprep.subr.mxu0 0.0
    %64 = vmatpush1.msra.mxu0 0.0
    %65 = vmatprep.subr.mxu0 0.0
    %66 = vmatpush1.msra.mxu0 0.0
    %67 = vmatprep.subr.mxu0 0.0
    %68 = vmatpush1.msra.mxu0 0.0
    %69 = vmatprep.subr.mxu0 0.0
    %70 = vmatpush1.msra.mxu0 0.0
    %71 = vmatprep.subr.mxu0 0.0
    %72 = vmatpush1.msra.mxu0 0.0
    %73 = vmatprep.subr.mxu0 0.0
    %74 = vmatpush1.msra.mxu0 0.0
    %75 = vmatprep.subr.mxu0 0.0
    %76 = vmatpush1.msra.mxu0 0.0
    %77 = vmatprep.subr.mxu0 0.0
    %78 = vmatpush1.msra.mxu0 0.0
    %79 = vmatprep.subr.mxu0 0.0
    %80 = vmatpush1.msra.mxu0 0.0
    %81 = vmatprep.subr.mxu0 0.0
    %82 = vmatpush1.msra.mxu0 0.0
    %83 = vmatprep.subr.mxu0 0.0
    %84 = vmatpush1.msra.mxu0 0.0
    %85 = vmatprep.subr.mxu0 0.0
    %86 = vmatpush1.msra.mxu0 0.0
    %87 = vmatprep.subr.mxu0 0.0
    %88 = vmatpush1.msra.mxu0 0.0
    %89 = vmatprep.subr.mxu0 0.0
    %90 = vmatpush1.msra.mxu0 0.0
    %91 = vmatprep.subr.mxu0 0.0
    %92 = vmatpush1.msra.mxu0 0.0
    %93 = vmatprep.subr.mxu0 0.0
    %94 = vmatpush1.msra.mxu0 0.0
    %95 = vmatprep.subr.mxu0 0.0
    %96 = vmatpush1.msra.mxu0 0.0
    %97 = vmatprep.subr.mxu0 0.0
    %98 = vmatpush1.msra.mxu0 0.0
    %99 = vmatprep.subr.mxu0 0.0
    %100 = vmatpush1.msra.mxu0 0.0
    %101 = vmatprep.subr.mxu0 0.0
    %102 = vmatpush1.msra.mxu0 0.0
    %103 = vmatprep.subr.mxu0 0.0
    %104 = vmatpush1.msra.mxu0 0.0
    %105 = vmatprep.subr.mxu0 0.0
    %106 = vmatpush1.msra.mxu0 0.0
    %107 = vmatprep.subr.mxu0 0.0
    %108 = vmatpush1.msra.mxu0 0.0
    %109 = vmatprep.subr.mxu0 0.0
    %110 = vmatpush1.msra.mxu0 0.0
    %111 = vmatprep.subr.mxu0 0.0
    %112 = vmatpush1.msra.mxu0 0.0
    %113 = vmatprep.subr.mxu0 0.0
    %114 = vmatpush1.msra.mxu0 0.0
    %115 = vmatprep.subr.mxu0 0.0
    %116 = vmatpush1.msra.mxu0 0.0
    %117 = vmatprep.subr.mxu0 0.0
    %118 = vmatpush1.msra.mxu0 0.0
    %119 = vmatprep.mubr.f32.mxu0 0.0
    %120 = vmatmul.mubr.f32.gmra.mrb[0].mxu0 %v53
    %v121 = vpop.f32.mrb[0].mxu0
    %v122 = vadd.f32 0.0, %v121
    %v123 = vpop.f32.mrb[0].mxu0
    %124 = vdwg.mxu0
    %v125 = vrot.slane %v122, 4
    %v126 = vadd.f32 %v122, %v125
    %v127 = vrot.slane %v126, 2
    %v128 = vadd.f32 %v126, %v127
    %v129 = vrot.slane %v128, 1
    %v130 = vadd.f32 %v128, %v129
    %v131 = vrcp.pop 8.0
    %v132 = vmul.f32 %v130, %v131
    %v133 = vsub.f32 %v122, %v132
    %v134 = vmul.f32 %v133, %v133
    %v135 = vrot.slane %v134, 4
    %v136 = vadd.f32 %v134, %v135
    %v137 = vrot.slane %v136, 2
    %v138 = vadd.f32 %v136, %v137
    %v139 = vrot.slane %v138, 1
    %v140 = vadd.f32 %v138, %v139
    %v141 = vmul.f32 %v140, %v131
    %v142 = vld [vmem:[%s3] sm:$0x1]
    %v143 = vadd.f32 %v141, 1e-05
    %v144 = vrsqrt.pop %v143
    %v145 = vmul.f32 %v142, %v144
    %v146 = vld [vmem:[%s4] sm:$0x1]
    %v147 = vmul.f32 %v132, %v145
    %v148 = vsub.f32 %v146, %v147
    %v150 = vlaneseq
    %v151 = vshrl.u32 %v150, 7
    %v152 = vsub.s32 0, %v151
    %v153 = vrot.slane %v145, %v152
    %v155 = vmul.f32 %v122, %v153
    %v157 = vlaneseq
    %v158 = vshrl.u32 %v157, 7
    %v159 = vsub.s32 0, %v158
    %v160 = vrot.slane %v148, %v159
    %v162 = vadd.f32 %v155, %v160
    %v163 = vmax.f32 %v162, 0.0
    %164 = vst [vmem:[#allocation9] sm:$0xff] %v163
    // Predicated region
    $region26: #{tpu_custom_call.1} parent=1 // pred_check
      _
    $region27: #{tpu_custom_call.1} parent=1 // pred_check_branch
      %166 = sbr.rel (0) target = $region29
    $region28: #{tpu_custom_call.1} parent=1 // pred_region
      %s168 = ssub.s32 128, 128
      %169 = vsyncadd [#allocation6], %s168
      %s171 = sshll.u32 [#allocation9], 4
      %s172 = int_to_ptr.vmem [resolvable:$true] %s171
      %174 = dma.vmem_to_hbm [thread:$0]  %s172, 128, %s5, [#allocation6]
    $region29: #{tpu_custom_call.1} parent=1 // pred_fallthru
      _
    // Predicated region
    $region30: #{tpu_custom_call.1} parent=1 // pred_check
      _
    $region31: #{tpu_custom_call.1} parent=1 // pred_check_branch
      %176 = sbr.rel (0) target = $region33
    $region32: #{tpu_custom_call.1} parent=1 // pred_region
      %177 = dma.done [#allocation6], 128
    $region33: #{tpu_custom_call.1} parent=1 // pred_fallthru
      _
    %178 = vsyncpa [#allocation5], 1
    %179 = vsyncpa [#allocation8], 1
    %180 = vsyncpa [#allocation6], 1

</llo_original>
